<compile_context>
chip_gen: v7x
topology: tpu7x:2x2x1
jax: 0.10.0
libtpu: 0.0.40
codegen_flags: <defaults>
</compile_context>

<pallas_src>
import jax
import jax.numpy as jnp
from jax.experimental import pallas as pl
from jax.experimental.pallas import tpu as pltpu


def _reorg_kernel(x_ref, perm_ref, o_ref):
    # x_ref:    (1, R, 2W)   R merged (channel, out-row) rows; a row-pair on lanes
    # perm_ref: (2W, 2W)     constant 0/1 permutation matrix (resident)
    # o_ref:    (1, 4, R, W2)
    w2 = o_ref.shape[-1]
    # Exact lane permutation via MXU: each output lane is one input lane * 1.0.
    y = jnp.dot(x_ref[0], perm_ref[...], preferred_element_type=jnp.float32)
    for b in range(4):  # branch order matches torch.cat: (h0w0, h1w0, h0w1, h1w1)
        o_ref[0, b, :, :] = y[:, b * w2:(b + 1) * w2].astype(o_ref.dtype)


def _pick_row_block(total_rows, cap=512):
    """Largest multiple of 8 dividing total_rows (<= cap); else the full extent."""
    best = None
    r = 8
    while r <= min(total_rows, cap):
        if total_rows % r == 0:
            best = r
        r += 8
    return best if best is not None else total_rows


def _build_permutation(W, dtype):
    # Output lane o = b*W2 + j with branch b = 2*p + q  (q = row parity, p = col parity).
    # Its source lane inside the folded 2W-wide row-pair is u = q*W + 2*j + p.
    W2 = W // 2
    o = jnp.arange(2 * W)
    b = o // W2
    j = o % W2
    p = b // 2
    q = b % 2
    src = q * W + 2 * j + p                              # (2W,)
    rows = jnp.arange(2 * W)[:, None]
    return (rows == src[None, :]).astype(dtype)          # P[u, o] = 1 iff u == src[o]


def reorg_forward(x):
    """x: (N, C, H, W) -> (N, 4C, H//2, W//2), matching the PyTorch ReOrg module."""
    N, C, H, W = x.shape
    assert H % 2 == 0 and W % 2 == 0, "ReOrg requires even H and W"
    H2, W2 = H // 2, W // 2

    total_rows = C * H2
    R = _pick_row_block(total_rows)
    grid = (N, total_rows // R)

    # Free (contiguous) reshape: row pairs folded onto the lane axis.
    x3 = x.reshape(N, total_rows, 2 * W)
    perm = _build_permutation(W, x.dtype)

    # VMEM estimate: double-buffered input + output tiles + resident permutation.
    itemsize = jnp.dtype(x.dtype).itemsize
    est = (2 * R * 2 * W + 2 * 4 * R * W2 + 2 * (2 * W) ** 2) * itemsize
    vmem_limit = int(min(max(2 * est, 32 * 1024 * 1024), 96 * 1024 * 1024))

    out4 = pl.pallas_call(
        _reorg_kernel,
        out_shape=jax.ShapeDtypeStruct((N, 4, total_rows, W2), x.dtype),
        grid=grid,
        in_specs=[
            pl.BlockSpec((1, R, 2 * W), lambda n, r: (n, r, 0)),
            pl.BlockSpec((2 * W, 2 * W), lambda n, r: (0, 0)),
        ],
        out_specs=pl.BlockSpec((1, 4, R, W2), lambda n, r: (n, 0, r, 0)),
        compiler_params=pltpu.CompilerParams(
            dimension_semantics=("parallel", "parallel"),
            vmem_limit_bytes=vmem_limit,
        ),
    )(x3, perm)

    # (N, 4, C*H2, W2) -> (N, 4C, H2, W2): contiguous (free) reshape; channel order
    # is [h-even/w-even, h-odd/w-even, h-even/w-odd, h-odd/w-odd] blocks of C,
    # identical to torch.cat(..., dim=1) in the reference module.
    return out4.reshape(N, 4 * C, H2, W2)


def _reorg_reference(x):
    return jnp.concatenate(
        [x[..., ::2, ::2], x[..., 1::2, ::2], x[..., ::2, 1::2], x[..., 1::2, 1::2]],
        axis=1,
    )


if __name__ == "__main__":
    key = jax.random.PRNGKey(0)
    N, C, H, W = 2, 4, 16, 16
    x = jax.random.normal(key, (N, C, H, W), jnp.float32)

    out = jax.block_until_ready(jax.jit(reorg_forward)(x))
    assert out.shape == (N, 4 * C, H // 2, W // 2), out.shape

    ref = jax.block_until_ready(_reorg_reference(x))
    assert jnp.allclose(out, ref, rtol=0.0, atol=0.0), float(
        jnp.max(jnp.abs(out - ref))
    )
    print("KERNEL_OK")
</pallas_src>

<mosaic_0001>
module attributes {stable_mosaic.version = 11 : i64} {
  func.func @_reorg_kernel(%arg0: i32, %arg1: i32, %arg2: memref<1x32x32xf32, #tpu.memory_space<vmem>>, %arg3: memref<32x32xf32, #tpu.memory_space<vmem>>, %arg4: memref<1x4x32x8xf32, #tpu.memory_space<vmem>>) attributes {dimension_semantics = [#tpu.dimension_semantics<parallel>, #tpu.dimension_semantics<parallel>], iteration_bounds = array<i64: 2, 1>, scalar_prefetch = 0 : i64, scratch_operands = 0 : i64, tpu.core_type = #tpu.core_type<tc>, window_params = [{transform_indices = @transform_0, window_bounds = array<i64: 1, 32, 32>}, {pipeline_mode = #tpu.pipeline_mode<synchronous>, transform_indices = @transform_1, window_bounds = array<i64: 32, 32>}, {transform_indices = @transform_2, window_bounds = array<i64: 1, 4, 32, 8>}]} {
    %c0 = arith.constant 0 : index
    %c0_0 = arith.constant 0 : index
    %c0_1 = arith.constant 0 : index
    %0 = vector.load %arg2[%c0, %c0_0, %c0_1] : memref<1x32x32xf32, #tpu.memory_space<vmem>>, vector<1x32x32xf32>
    %1 = vector.shape_cast %0 : vector<1x32x32xf32> to vector<32x32xf32>
    %c0_2 = arith.constant 0 : index
    %c0_3 = arith.constant 0 : index
    %2 = vector.load %arg3[%c0_2, %c0_3] : memref<32x32xf32, #tpu.memory_space<vmem>>, vector<32x32xf32>
    %cst = arith.constant dense<0.000000e+00> : vector<32x32xf32>
    %3 = tpu.matmul %1, %2, %cst {dimension_numbers = #tpu.dot_dimension_numbers<[1], [0], [0], [1], [0, 0, 1, 1], [], []>} : vector<32x32xf32>, vector<32x32xf32>, vector<32x32xf32> -> vector<32x32xf32>
    %4 = vector.extract_strided_slice %3 {offsets = [0, 0], sizes = [32, 8], strides = [1, 1]} : vector<32x32xf32> to vector<32x8xf32>
    %c0_4 = arith.constant 0 : index
    %c0_5 = arith.constant 0 : index
    %c0_6 = arith.constant 0 : index
    %c0_7 = arith.constant 0 : index
    %5 = vector.load %arg4[%c0_4, %c0_5, %c0_6, %c0_7] : memref<1x4x32x8xf32, #tpu.memory_space<vmem>>, vector<1x1x32x8xf32>
    %6 = vector.shape_cast %5 : vector<1x1x32x8xf32> to vector<32x8xf32>
    %7 = vector.shape_cast %4 : vector<32x8xf32> to vector<1x1x32x8xf32>
    tpu.vector_store %arg4[%c0_4, %c0_5, %c0_6, %c0_7], %7 {strides = array<i32>} : memref<1x4x32x8xf32, #tpu.memory_space<vmem>>, vector<1x1x32x8xf32>,
    %8 = vector.extract_strided_slice %3 {offsets = [0, 8], sizes = [32, 8], strides = [1, 1]} : vector<32x32xf32> to vector<32x8xf32>
    %c0_8 = arith.constant 0 : index
    %c1 = arith.constant 1 : index
    %c0_9 = arith.constant 0 : index
    %c0_10 = arith.constant 0 : index
    %9 = vector.load %arg4[%c0_8, %c1, %c0_9, %c0_10] : memref<1x4x32x8xf32, #tpu.memory_space<vmem>>, vector<1x1x32x8xf32>
    %10 = vector.shape_cast %9 : vector<1x1x32x8xf32> to vector<32x8xf32>
    %11 = vector.shape_cast %8 : vector<32x8xf32> to vector<1x1x32x8xf32>
    tpu.vector_store %arg4[%c0_8, %c1, %c0_9, %c0_10], %11 {strides = array<i32>} : memref<1x4x32x8xf32, #tpu.memory_space<vmem>>, vector<1x1x32x8xf32>,
    %12 = vector.extract_strided_slice %3 {offsets = [0, 16], sizes = [32, 8], strides = [1, 1]} : vector<32x32xf32> to vector<32x8xf32>
    %c0_11 = arith.constant 0 : index
    %c2 = arith.constant 2 : index
    %c0_12 = arith.constant 0 : index
    %c0_13 = arith.constant 0 : index
    %13 = vector.load %arg4[%c0_11, %c2, %c0_12, %c0_13] : memref<1x4x32x8xf32, #tpu.memory_space<vmem>>, vector<1x1x32x8xf32>
    %14 = vector.shape_cast %13 : vector<1x1x32x8xf32> to vector<32x8xf32>
    %15 = vector.shape_cast %12 : vector<32x8xf32> to vector<1x1x32x8xf32>
    tpu.vector_store %arg4[%c0_11, %c2, %c0_12, %c0_13], %15 {strides = array<i32>} : memref<1x4x32x8xf32, #tpu.memory_space<vmem>>, vector<1x1x32x8xf32>,
    %16 = vector.extract_strided_slice %3 {offsets = [0, 24], sizes = [32, 8], strides = [1, 1]} : vector<32x32xf32> to vector<32x8xf32>
    %c0_14 = arith.constant 0 : index
    %c3 = arith.constant 3 : index
    %c0_15 = arith.constant 0 : index
    %c0_16 = arith.constant 0 : index
    %17 = vector.load %arg4[%c0_14, %c3, %c0_15, %c0_16] : memref<1x4x32x8xf32, #tpu.memory_space<vmem>>, vector<1x1x32x8xf32>
    %18 = vector.shape_cast %17 : vector<1x1x32x8xf32> to vector<32x8xf32>
    %19 = vector.shape_cast %16 : vector<32x8xf32> to vector<1x1x32x8xf32>
    tpu.vector_store %arg4[%c0_14, %c3, %c0_15, %c0_16], %19 {strides = array<i32>} : memref<1x4x32x8xf32, #tpu.memory_space<vmem>>, vector<1x1x32x8xf32>,
    return
  }
  func.func @transform_0(%arg0: i32, %arg1: i32) -> (i32, i32, i32) {
    %c0_i32 = arith.constant 0 : i32
    %c0_i32_0 = arith.constant 0 : i32
    return %arg0, %arg1, %c0_i32 : i32, i32, i32
  }
  func.func @transform_1(%arg0: i32, %arg1: i32) -> (i32, i32) {
    %c0_i32 = arith.constant 0 : i32
    %c0_i32_0 = arith.constant 0 : i32
    %c0_i32_1 = arith.constant 0 : i32
    return %c0_i32, %c0_i32_0 : i32, i32
  }
  func.func @transform_2(%arg0: i32, %arg1: i32) -> (i32, i32, i32, i32) {
    %c0_i32 = arith.constant 0 : i32
    %c0_i32_0 = arith.constant 0 : i32
    %c0_i32_1 = arith.constant 0 : i32
    return %arg0, %c0_i32, %arg1, %c0_i32_0 : i32, i32, i32, i32
  }
}

</mosaic_0001>

<llo_original>
// kernel: reorg_forward.1
$region0: #{reorg_forward.1}
  #allocation0 [shape = 'u32[]', space=smem, size = 0x4, offset = 0x4, fixed_abs, tag = 'smem constant byte address 0x4 - core index']
  #allocation1 [shape = 'u32[144,128]{1,0:T(1,128)}', space=vmem, size = 0x12000, scoped, tag = 'internal scratch']
  %s0 = inlined_call_operand.vmem [shape: f32[2,32,32], index: 0, kind: input, shape index: {}]
  %s1 = inlined_call_operand.vmem [shape: f32[32,32], index: 1, kind: input, shape index: {}]
  %s2 = inlined_call_operand.vmem [shape: f32[2,4,32,8], index: 2, kind: output, shape index: {}]
  %s3 = sld [smem:[#allocation0]]
  $region41: #{reorg_forward.1} parent=0
    _
  %s5 = ssub.s32 1, %s3
  %s6 = scalar_select 0, %s5, %s3
  loop: start=0, step=1, limit=4
  $region2: #{reorg_forward.1} parent=0 // loop_pre_header
    _
  $region3: #{reorg_forward.1} parent=0 // loop_header
    %s8 = sphi 0, %s12
    %p9 = scmp.ge.s32.totalorder %s8, 4
    %s15 = sphi 0, %s27
    %s16 = sphi 0, %s23
    %s17 = sphi 0, %s15
    %s18 = sphi 0, %s16
    %s19 = sphi 0, %s17
    %s20 = sphi 0, %s18
    %s32 = sphi 0, %s34
    %s35 = sphi 0, %s32
    %s36 = sphi 0, %s35
    %s52 = sphi 0, %s36
    %s56 = sphi 0, %s56
    %s58 = sphi 0, %s56
    %s59 = sphi 0, %s58
    %s73 = sphi 0, %s59
    %s81 = sphi 0, %s83
    %s84 = sphi 0, %s81
    %s85 = sphi 0, %s84
    %s101 = sphi 0, %s85
  $region4: #{reorg_forward.1} parent=0 // loop_header_branch
    %11 = sbr.rel (%p9) target = $region8
  $region5: #{reorg_forward.1} parent=0 // loop_body
    %s13 = ssub.s32 %s8, 1
    %s14 = ssub.s32 %s8, 2
    %s21 = sadd.s32 1, %s16
    %p22 = scmp.ge.s32.totalorder %s21, 1
    %s23 = scalar_select %p22, 0, %s21
    %s24 = sadd.s32 1, %s15
    %s25 = scalar_select %p22, %s24, %s15
    %p26 = scmp.ge.s32.totalorder %s25, 2
    %s27 = scalar_select %p26, 0, %s25
    %s28 = ssub.s32 %s15, %s27
    %s29 = ssub.s32 %s16, %s23
    %s30 = sor.u32 %s28, %s29
    %p31 = scmp.eq.s32.totalorder %s30, 0
    %s33 = sadd.s32 %s32, 1
    %s34 = scalar_select %p31, %s32, %s33
    %p37 = pneg %p31
    %p38 = scmp.eq.s32.totalorder %s8, 1
    %p39 = por %p37, %p38
    %p40 = scmp.ne.s32.totalorder %s32, %s35
    %p41 = scmp.eq.s32.totalorder %s8, 0
    %p42 = por %p40, %p41
    %p43 = scmp.ne.s32.totalorder %s32, %s35
    %p44 = scmp.eq.s32.totalorder %s13, 1
    %p45 = por %p43, %p44
    %p46 = scmp.ne.s32.totalorder %s35, %s36
    %p47 = scmp.eq.s32.totalorder %s13, 0
    %p48 = por %p46, %p47
    %p49 = scmp.ne.s32.totalorder %s35, %s36
    %p50 = scmp.eq.s32.totalorder %s14, 1
    %p51 = por %p49, %p50
    %p53 = scmp.ne.s32.totalorder %s36, %s52
    %p54 = scmp.eq.s32.totalorder %s14, 0
    %p55 = por %p53, %p54
    %s57 = sadd.s32 %s56, 1
    %p60 = scmp.eq.s32.totalorder %s8, 1
    %p61 = scmp.ne.s32.totalorder %s56, %s58
    %p62 = scmp.eq.s32.totalorder %s8, 0
    %p63 = por %p61, %p62
    %p64 = scmp.ne.s32.totalorder %s56, %s58
    %p65 = scmp.eq.s32.totalorder %s13, 1
    %p66 = por %p64, %p65
    %p67 = scmp.ne.s32.totalorder %s58, %s59
    %p68 = scmp.eq.s32.totalorder %s13, 0
    %p69 = por %p67, %p68
    %p70 = scmp.ne.s32.totalorder %s58, %s59
    %p71 = scmp.eq.s32.totalorder %s14, 1
    %p72 = por %p70, %p71
    %p74 = scmp.ne.s32.totalorder %s59, %s73
    %p75 = scmp.eq.s32.totalorder %s14, 0
    %p76 = por %p74, %p75
    %s77 = ssub.s32 %s15, %s27
    %s78 = ssub.s32 %s16, %s23
    %s79 = sor.u32 %s77, %s78
    %p80 = scmp.eq.s32.totalorder %s79, 0
    %s82 = sadd.s32 %s81, 1
    %s83 = scalar_select %p80, %s81, %s82
    %p86 = pneg %p80
    %p87 = scmp.eq.s32.totalorder %s8, 1
    %p88 = por %p86, %p87
    %p89 = scmp.ne.s32.totalorder %s81, %s84
    %p90 = scmp.eq.s32.totalorder %s8, 0
    %p91 = por %p89, %p90
    %p92 = scmp.ne.s32.totalorder %s81, %s84
    %p93 = scmp.eq.s32.totalorder %s13, 1
    %p94 = por %p92, %p93
    %p95 = scmp.ne.s32.totalorder %s84, %s85
    %p96 = scmp.eq.s32.totalorder %s13, 0
    %p97 = por %p95, %p96
    %p98 = scmp.ne.s32.totalorder %s84, %s85
    %p99 = scmp.eq.s32.totalorder %s14, 1
    %p100 = por %p98, %p99
    %p102 = scmp.ne.s32.totalorder %s85, %s101
    %p103 = scmp.eq.s32.totalorder %s14, 0
    %p104 = por %p102, %p103
    %p105 = scmp.le.s32.totalorder 1, %s8
    %p106 = scmp.lt.s32.totalorder %s8, 3
    %p107 = pnand %p105, %p106
    %p108 = pneg %p107
    // Predicated region
    $region9: #{reorg_forward.1} parent=5 // pred_check
      _
    $region10: #{reorg_forward.1} parent=5 // pred_check_branch
      %110 = sbr.rel (%p107) target = $region12
    $region11: #{reorg_forward.1} parent=5 // pred_region
      %s111 = ssub.s32 %s8, 1
      // Predicated region
      $region13: #{reorg_forward.1} parent=11 // pred_check
        %p112 = pneg %p69
      $region14: #{reorg_forward.1} parent=11 // pred_check_branch
        %114 = sbr.rel (%p112) target = $region16
      $region15: #{reorg_forward.1} parent=11 // pred_region
        _
      $region16: #{reorg_forward.1} parent=11 // pred_fallthru
        _
    $region12: #{reorg_forward.1} parent=5 // pred_fallthru
      _
    %p115 = scmp.lt.s32.totalorder %s8, 2
    // Predicated region
    $region17: #{reorg_forward.1} parent=5 // pred_check
      %p116 = pneg %p115
    $region18: #{reorg_forward.1} parent=5 // pred_check_branch
      %118 = sbr.rel (%p116) target = $region20
    $region19: #{reorg_forward.1} parent=5 // pred_region
      // Predicated region
      $region21: #{reorg_forward.1} parent=19 // pred_check
        %p119 = pneg %p42
      $region22: #{reorg_forward.1} parent=19 // pred_check_branch
        %121 = sbr.rel (%p119) target = $region24
      $region23: #{reorg_forward.1} parent=19 // pred_region
        %s122 = smul.u32 4, %s16
        %p123 = scmp.lt.s32.totalorder %s15, 1
        %s124 = scalar_select %p123, %s15, 1
        %p125 = scmp.lt.s32.totalorder %s122, 3
        %s126 = scalar_select %p125, %s122, 3
        %s127 = smul.addr %s124, 4
        %s128 = sadd.s32 %s126, %s127
        %s129 = smul.addr %s128, 8
        %s130 = scalar_lea.vmem %s0, %s129
        %s131 = smul.u32 4, %s16
      $region24: #{reorg_forward.1} parent=19 // pred_fallthru
        _
    $region20: #{reorg_forward.1} parent=5 // pred_fallthru
      _
    %p132 = scmp.le.s32.totalorder 1, %s8
    %p133 = scmp.lt.s32.totalorder %s8, 3
    %p134 = pnand %p132, %p133
    %p135 = pneg %p134
    // Predicated region
    $region25: #{reorg_forward.1} parent=5 // pred_check
      _
    $region26: #{reorg_forward.1} parent=5 // pred_check_branch
      %137 = sbr.rel (%p134) target = $region28
    $region27: #{reorg_forward.1} parent=5 // pred_region
      %s138 = ssub.s32 %s8, 1
      %s139 = smul.u32 4, %s18
      %p140 = scmp.lt.s32.totalorder %s17, 1
      %s141 = scalar_select %p140, %s17, 1
      %p142 = scmp.lt.s32.totalorder %s139, 3
      %s143 = scalar_select %p142, %s139, 3
      %s144 = smul.addr %s141, 4
      %s145 = sadd.s32 %s143, %s144
      %s146 = smul.addr %s145, 8
      %s147 = scalar_lea.vmem %s0, %s146
      %p148 = pneg %p48
      %p149 = pneg %p45
      %p150 = pneg %p69
      %p151 = pneg %p66
      %p152 = pneg %p97
      %p153 = pneg %p94
      %s154 = smul.u32 4, %s18
      %p155 = scmp.lt.s32.totalorder %s17, 1
      %s156 = scalar_select %p155, %s17, 1
      %p157 = scmp.lt.s32.totalorder %s154, 3
      %s158 = scalar_select %p157, %s154, 3
      %s159 = smul.addr %s156, 16
      %s160 = sadd.s32 %s158, %s159
      %s161 = smul.addr %s160, 8
      %s162 = scalar_lea.vmem %s2, %s161
      %s163 = smul.u32 4, %s18
      %p164 = scmp.lt.s32.totalorder %s17, 1
      %s165 = scalar_select %p164, %s17, 1
      %p166 = scmp.lt.s32.totalorder %s163, 3
      %s167 = scalar_select %p166, %s163, 3
      %s168 = smul.addr %s165, 4
      %s169 = sadd.s32 %s167, %s168
      %s170 = smul.addr %s169, 8
      %s171 = scalar_lea.vmem %s0, %s170
      %s172 = smul.u32 4, %s18
      %s173 = smul.u32 4, %s18
      %p174 = scmp.lt.s32.totalorder %s17, 1
      %s175 = scalar_select %p174, %s17, 1
      %p176 = scmp.lt.s32.totalorder %s173, 3
      %s177 = scalar_select %p176, %s173, 3
      %s178 = smul.addr %s175, 16
      %s179 = sadd.s32 %s177, %s178
      %s180 = smul.addr %s179, 8
      %s181 = scalar_lea.vmem %s2, %s180
      %s182 = smul.u32 4, %s18
      %v183 = vld [vmem:[%s171] sm:$0xff]
      %v184 = vld [vmem:[%s171 + $0x8] sm:$0xff]
      %v185 = vld [vmem:[%s171 + $0x10] sm:$0xff]
      %v186 = vld [vmem:[%s171 + $0x18] sm:$0xff]
      %v187 = vld [vmem:[%s1] sm:$0xff]
      %v188 = vld [vmem:[%s1 + $0x8] sm:$0xff]
      %v189 = vld [vmem:[%s1 + $0x10] sm:$0xff]
      %v190 = vld [vmem:[%s1 + $0x18] sm:$0xff]
      %vm191 = vcmask 261120
      %v193 = vsel %vm191, %v183, 0
      %v196 = vsel %vm191, %v184, 0
      %v199 = vsel %vm191, %v185, 0
      %v202 = vsel %vm191, %v186, 0
      %204 = vmatprep.subr.mxu0 0.0
      %205 = vmatpush1.msra.mxu0 %v187
      %206 = vmatprep.subr.mxu0 0.0
      %207 = vmatpush1.msra.mxu0 %v188
      %208 = vmatprep.subr.mxu0 0.0
      %209 = vmatpush1.msra.mxu0 %v189
      %210 = vmatprep.subr.mxu0 0.0
      %211 = vmatpush1.msra.mxu0 %v190
      %212 = vmatprep.subr.mxu0 0.0
      %213 = vmatpush1.msra.mxu0 0.0
      %214 = vmatprep.subr.mxu0 0.0
      %215 = vmatpush1.msra.mxu0 0.0
      %216 = vmatprep.subr.mxu0 0.0
      %217 = vmatpush1.msra.mxu0 0.0
      %218 = vmatprep.subr.mxu0 0.0
      %219 = vmatpush1.msra.mxu0 0.0
      %220 = vmatprep.subr.mxu0 0.0
      %221 = vmatpush1.msra.mxu0 0.0
      %222 = vmatprep.subr.mxu0 0.0
      %223 = vmatpush1.msra.mxu0 0.0
      %224 = vmatprep.subr.mxu0 0.0
      %225 = vmatpush1.msra.mxu0 0.0
      %226 = vmatprep.subr.mxu0 0.0
      %227 = vmatpush1.msra.mxu0 0.0
      %228 = vmatprep.subr.mxu0 0.0
      %229 = vmatpush1.msra.mxu0 0.0
      %230 = vmatprep.subr.mxu0 0.0
      %231 = vmatpush1.msra.mxu0 0.0
      %232 = vmatprep.subr.mxu0 0.0
      %233 = vmatpush1.msra.mxu0 0.0
      %234 = vmatprep.subr.mxu0 0.0
      %235 = vmatpush1.msra.mxu0 0.0
      %236 = vmatprep.subr.mxu0 0.0
      %237 = vmatpush1.msra.mxu0 0.0
      %238 = vmatprep.subr.mxu0 0.0
      %239 = vmatpush1.msra.mxu0 0.0
      %240 = vmatprep.subr.mxu0 0.0
      %241 = vmatpush1.msra.mxu0 0.0
      %242 = vmatprep.subr.mxu0 0.0
      %243 = vmatpush1.msra.mxu0 0.0
      %244 = vmatprep.subr.mxu0 0.0
      %245 = vmatpush1.msra.mxu0 0.0
      %246 = vmatprep.subr.mxu0 0.0
      %247 = vmatpush1.msra.mxu0 0.0
      %248 = vmatprep.subr.mxu0 0.0
      %249 = vmatpush1.msra.mxu0 0.0
      %250 = vmatprep.subr.mxu0 0.0
      %251 = vmatpush1.msra.mxu0 0.0
      %252 = vmatprep.subr.mxu0 0.0
      %253 = vmatpush1.msra.mxu0 0.0
      %254 = vmatprep.subr.mxu0 0.0
      %255 = vmatpush1.msra.mxu0 0.0
      %256 = vmatprep.subr.mxu0 0.0
      %257 = vmatpush1.msra.mxu0 0.0
      %258 = vmatprep.subr.mxu0 0.0
      %259 = vmatpush1.msra.mxu0 0.0
      %260 = vmatprep.subr.mxu0 0.0
      %261 = vmatpush1.msra.mxu0 0.0
      %262 = vmatprep.subr.mxu0 0.0
      %263 = vmatpush1.msra.mxu0 0.0
      %264 = vmatprep.subr.mxu0 0.0
      %265 = vmatpush1.msra.mxu0 0.0
      %266 = vmatprep.subr.mxu0 0.0
      %267 = vmatpush1.msra.mxu0 0.0
      %268 = vmatprep.mubr.f32.mxu0 0.0
      %269 = vmatmul.mubr.f32.gmra.mrb[0].mxu0 %v193
      %v270 = vpop.f32.mrb[0].mxu0
      %v271 = vadd.f32 0.0, %v270
      %v272 = vpop.f32.mrb[0].mxu0
      %273 = vmatprep.mubr.f32.mxu0 0.0
      %274 = vmatmul.mubr.f32.gmra.mrb[0].mxu0 %v196
      %v275 = vpop.f32.mrb[0].mxu0
      %v276 = vadd.f32 0.0, %v275
      %v277 = vpop.f32.mrb[0].mxu0
      %278 = vmatprep.mubr.f32.mxu0 0.0
      %279 = vmatmul.mubr.f32.gmra.mrb[0].mxu0 %v199
      %v280 = vpop.f32.mrb[0].mxu0
      %v281 = vadd.f32 0.0, %v280
      %v282 = vpop.f32.mrb[0].mxu0
      %283 = vmatprep.mubr.f32.mxu0 0.0
      %284 = vmatmul.mubr.f32.gmra.mrb[0].mxu0 %v202
      %v285 = vpop.f32.mrb[0].mxu0
      %v286 = vadd.f32 0.0, %v285
      %v287 = vpop.f32.mrb[0].mxu0
      %288 = vdwg.mxu0
      %vm289 = vcmask 64512
      %290 = vst.msk [vmem:[%s181] sm:$0xff] %vm289, %v271
      %291 = vst.msk [vmem:[%s181 + $0x8] sm:$0xff] %vm289, %v276
      %292 = vst.msk [vmem:[%s181 + $0x10] sm:$0xff] %vm289, %v281
      %293 = vst.msk [vmem:[%s181 + $0x18] sm:$0xff] %vm289, %v286
      %298 = vrot.lane.b32.xlu0 %v271, 120
      %v299 = vpop.permute.xlu0 %298
      %300 = vrot.lane.b32.xlu0 %v276, 120
      %v301 = vpop.permute.xlu0 %300
      %302 = vrot.lane.b32.xlu0 %v281, 120
      %v303 = vpop.permute.xlu0 %302
      %304 = vrot.lane.b32.xlu0 %v286, 120
      %v305 = vpop.permute.xlu0 %304
      %s310 = scalar_lea.vmem %s181, 32
      %311 = vst.msk [vmem:[%s310] sm:$0xff] %vm289, %v299
      %312 = vst.msk [vmem:[%s310 + $0x8] sm:$0xff] %vm289, %v301
      %313 = vst.msk [vmem:[%s310 + $0x10] sm:$0xff] %vm289, %v303
      %314 = vst.msk [vmem:[%s310 + $0x18] sm:$0xff] %vm289, %v305
      %315 = vrot.lane.b32.xlu0 %v271, 112
      %v316 = vpop.permute.xlu0 %315
      %317 = vrot.lane.b32.xlu0 %v276, 112
      %v318 = vpop.permute.xlu0 %317
      %319 = vrot.lane.b32.xlu0 %v281, 112
      %v320 = vpop.permute.xlu0 %319
      %321 = vrot.lane.b32.xlu0 %v286, 112
      %v322 = vpop.permute.xlu0 %321
      %s327 = scalar_lea.vmem %s181, 64
      %328 = vst.msk [vmem:[%s327] sm:$0xff] %vm289, %v316
      %329 = vst.msk [vmem:[%s327 + $0x8] sm:$0xff] %vm289, %v318
      %330 = vst.msk [vmem:[%s327 + $0x10] sm:$0xff] %vm289, %v320
      %331 = vst.msk [vmem:[%s327 + $0x18] sm:$0xff] %vm289, %v322
      %332 = vrot.lane.b32.xlu0 %v271, 104
      %v333 = vpop.permute.xlu0 %332
      %334 = vrot.lane.b32.xlu0 %v276, 104
      %v335 = vpop.permute.xlu0 %334
      %336 = vrot.lane.b32.xlu0 %v281, 104
      %v337 = vpop.permute.xlu0 %336
      %338 = vrot.lane.b32.xlu0 %v286, 104
      %v339 = vpop.permute.xlu0 %338
      %s344 = scalar_lea.vmem %s181, 96
      %345 = vst.msk [vmem:[%s344] sm:$0xff] %vm289, %v333
      %346 = vst.msk [vmem:[%s344 + $0x8] sm:$0xff] %vm289, %v335
      %347 = vst.msk [vmem:[%s344 + $0x10] sm:$0xff] %vm289, %v337
      %348 = vst.msk [vmem:[%s344 + $0x18] sm:$0xff] %vm289, %v339
      %s349 = smul.u32 4, %s18
      %p350 = scmp.lt.s32.totalorder %s17, 1
      %s351 = scalar_select %p350, %s17, 1
      %p352 = scmp.lt.s32.totalorder %s349, 3
      %s353 = scalar_select %p352, %s349, 3
      %s354 = smul.addr %s351, 16
      %s355 = sadd.s32 %s353, %s354
      %s356 = smul.addr %s355, 8
      %s357 = scalar_lea.vmem %s2, %s356
      // Predicated region
      $region29: #{reorg_forward.1} parent=27 // pred_check
        %p358 = pneg %p94
      $region30: #{reorg_forward.1} parent=27 // pred_check_branch
        %360 = sbr.rel (%p358) target = $region32
      $region31: #{reorg_forward.1} parent=27 // pred_region
        %s361 = smul.u32 4, %s18
      $region32: #{reorg_forward.1} parent=27 // pred_fallthru
        _
    $region28: #{reorg_forward.1} parent=5 // pred_fallthru
      _
    %p362 = scmp.le.s32.totalorder 2, %s8
    // Predicated region
    $region33: #{reorg_forward.1} parent=5 // pred_check
      %p363 = pneg %p362
    $region34: #{reorg_forward.1} parent=5 // pred_check_branch
      %365 = sbr.rel (%p363) target = $region36
    $region35: #{reorg_forward.1} parent=5 // pred_region
      %s366 = ssub.s32 %s8, 2
      // Predicated region
      $region37: #{reorg_forward.1} parent=35 // pred_check
        %p367 = pneg %p100
      $region38: #{reorg_forward.1} parent=35 // pred_check_branch
        %369 = sbr.rel (%p367) target = $region40
      $region39: #{reorg_forward.1} parent=35 // pred_region
        %s370 = smul.u32 4, %s20
        %p371 = scmp.lt.s32.totalorder %s19, 1
        %s372 = scalar_select %p371, %s19, 1
        %p373 = scmp.lt.s32.totalorder %s370, 3
        %s374 = scalar_select %p373, %s370, 3
        %s375 = smul.addr %s372, 16
        %s376 = sadd.s32 %s374, %s375
        %s377 = smul.addr %s376, 8
        %s378 = scalar_lea.vmem %s2, %s377
      $region40: #{reorg_forward.1} parent=35 // pred_fallthru
        _
    $region36: #{reorg_forward.1} parent=5 // pred_fallthru
      _
  $region6: #{reorg_forward.1} parent=0 // loop_footer
    %s12 = sadd.s32 1, %s8
  $region7: #{reorg_forward.1} parent=0 // loop_footer_branch
    %7 = sbr.rel target = $region3
  $region8: #{reorg_forward.1} parent=0 // loop_exit
    _

</llo_original>
